<compile_context>
chip_gen: v7x
topology: tpu7x:2x2x1
jax: 0.10.0
libtpu: 0.0.40
codegen_flags: <defaults>
</compile_context>

<pallas_src>
import functools

import jax
import jax.numpy as jnp
from jax import lax
from jax.experimental import pallas as pl
from jax.experimental.pallas import tpu as pltpu


# ----------------------------------------------------------------------------
# Generation-aware tiling helpers
# ----------------------------------------------------------------------------
_TILE_CANDIDATES = (512, 256, 128, 64, 32, 16, 8)


def _round_up(x, m):
    return ((x + m - 1) // m) * m


def _gen_params():
    """Row-tile cap + scoped-VMEM limit per TPU generation."""
    try:
        vmem_cap = int(pltpu.get_tpu_info().vmem_capacity_bytes)
    except Exception:
        vmem_cap = 64 * 1024 * 1024          # assume the small-VMEM part (v7x)
    if vmem_cap >= 100 * 1024 * 1024:        # v5e / v6e: 128 MiB physical
        return {"tile_cap": 512, "vmem_limit": 96 * 1024 * 1024}
    # v7x: 64 MiB physical, 2 TensorCores -> smaller tiles, want >=2 row tiles
    return {"tile_cap": 256, "vmem_limit": 48 * 1024 * 1024}


def _pick_tile(total, cap, fits, *, want_multiple_tiles=False, min_tile=8):
    """Largest candidate tile dividing `total`, under `cap`, passing `fits`."""
    for t in _TILE_CANDIDATES:
        if t > cap or t < min_tile or total % t:
            continue
        if want_multiple_tiles and 2 * t > total and t > 8:
            continue                          # keep >=2 row tiles (megacore)
        if fits(t):
            return t
    for t in reversed(_TILE_CANDIDATES):      # last resort: smallest divisor
        if total % t == 0:
            return t
    return total


# ----------------------------------------------------------------------------
# Kernel 0: normalization pre-pass  (stage == 'encode')
#   zhat = (z / max(||z||, eps)) / sqrt(T)   stored as bf16
#   pos  = <zhat_i, zhat_j> per row          stored as f32   (= cos / T)
# Each element is touched exactly once, instead of O(N / row_tile) times.
# ----------------------------------------------------------------------------
def _prep_kernel(zi_ref, zj_ref, zi_out, zj_out, pos_out, *, inv_sqrt_t, eps):
    def norm(ref):
        x = ref[...].astype(jnp.float32)
        ssq = jnp.sum(x * x, axis=-1, keepdims=True)
        # NOTE: torch CosineSimilarity clamps ||x||*||y|| with eps; we clamp
        # each squared norm with eps^2 -- only differs for ~zero-norm rows.
        inv = lax.rsqrt(jnp.maximum(ssq, jnp.float32(eps * eps)))
        return x * (inv * jnp.float32(inv_sqrt_t))

    a_i = norm(zi_ref)
    a_j = norm(zj_ref)
    pos_out[...] = jnp.sum(a_i * a_j, axis=-1, keepdims=True)    # f32 cos / T
    zi_out[...] = a_i.astype(jnp.bfloat16)
    zj_out[...] = a_j.astype(jnp.bfloat16)


# ----------------------------------------------------------------------------
# Kernel 1: NT-Xent main pass over the (N, N) similarity tile grid.
#   grid = (N/T, N/T); one bf16 (T,D)x(D,T) MXU matmul per step; flash-style
#   online logsumexp in (T,1) f32 scratch; diagonal removed only on r==c.
# ----------------------------------------------------------------------------
def _nt_xent_kernel(q_ref, k_ref, pos_ref, out_ref, m_sc, l_sc, *, n_pad_cols):
    r = pl.program_id(0)
    c = pl.program_id(1)
    n_c = pl.num_programs(1)

    @pl.when(c == 0)
    def _init():
        m_sc[...] = jnp.full_like(m_sc, -1e30)
        l_sc[...] = jnp.zeros_like(l_sc)

    # Pre-normalized bf16 operands -> single wide MXU matmul, f32 accumulation.
    dn = (((1,), (1,)), ((), ()))            # contract feature dim of BOTH
    s = lax.dot_general(q_ref[...], k_ref[...], dn,
                        preferred_element_type=jnp.float32)       # (T, T)

    row_max = jnp.max(s, axis=-1, keepdims=True)
    m_new = jnp.maximum(m_sc[...], row_max)
    l_sc[...] = (l_sc[...] * jnp.exp(m_sc[...] - m_new)
                 + jnp.sum(jnp.exp(s - m_new), axis=-1, keepdims=True))
    m_sc[...] = m_new

    @pl.when(r == c)
    def _drop_self_similarity():
        # Only the N/T diagonal tiles pay for the iota / compare / select.
        eye = (lax.broadcasted_iota(jnp.int32, s.shape, 0)
               == lax.broadcasted_iota(jnp.int32, s.shape, 1))
        diag = jnp.sum(jnp.where(eye, s, 0.0), axis=-1, keepdims=True)
        l_sc[...] = l_sc[...] - jnp.exp(diag - m_sc[...])

    @pl.when(c == n_c - 1)
    def _finalize():
        l = l_sc[...]
        if n_pad_cols:   # static: zero-padded rows have similarity exactly 0
            l = l - jnp.float32(n_pad_cols) * jnp.exp(-m_sc[...])
        out_ref[...] = m_sc[...] + jnp.log(l) - pos_ref[...]


def nt_xent_loss(z_i, z_j, temperature, eps=1e-8, row_tile=None):
    b = z_i.shape[0]
    z_i = z_i.reshape(b, -1)                 # torch's z.view(B, -1)
    z_j = z_j.reshape(b, -1)
    d = z_i.shape[1]
    n = 2 * b

    gen = _gen_params()
    vmem_limit = gen["vmem_limit"]
    budget = int(vmem_limit * 0.75)
    cap = gen["tile_cap"]

    # Pad the batch so every tile is a clean multiple of 8 rows.  Padded (zero)
    # columns are exactly corrected in-kernel and padded rows are sliced out of
    # the final sum, so we never fall back to a single full-size row tile.
    b_pad = _round_up(b, 8)
    if b_pad != b:
        z_i = jnp.pad(z_i, ((0, b_pad - b), (0, 0)))
        z_j = jnp.pad(z_j, ((0, b_pad - b), (0, 0)))

    itemsize = z_i.dtype.itemsize
    inv_sqrt_t = 1.0 / float(temperature) ** 0.5

    # ------------- pre-pass: normalize + fold 1/sqrt(T), emit bf16 ----------
    def prep_fits(t):
        # 2 native inputs (double-buffered) + 2 f32 copies + 2 bf16 outputs
        return t * d * (4 * itemsize + 2 * 4 + 4 * 2) + 32 * t <= budget

    t_pre = _pick_tile(b_pad, cap, prep_fits)
    prep = functools.partial(_prep_kernel, inv_sqrt_t=inv_sqrt_t, eps=float(eps))
    zhat_i, zhat_j, pos = pl.pallas_call(
        prep,
        out_shape=(jax.ShapeDtypeStruct((b_pad, d), jnp.bfloat16),
                   jax.ShapeDtypeStruct((b_pad, d), jnp.bfloat16),
                   jax.ShapeDtypeStruct((b_pad, 1), jnp.float32)),
        grid_spec=pltpu.PrefetchScalarGridSpec(
            num_scalar_prefetch=0,
            grid=(b_pad // t_pre,),
            in_specs=[pl.BlockSpec((t_pre, d), lambda i: (i, 0)),
                      pl.BlockSpec((t_pre, d), lambda i: (i, 0))],
            out_specs=[pl.BlockSpec((t_pre, d), lambda i: (i, 0)),
                       pl.BlockSpec((t_pre, d), lambda i: (i, 0)),
                       pl.BlockSpec((t_pre, 1), lambda i: (i, 0))],
        ),
        compiler_params=pltpu.CompilerParams(
            dimension_semantics=("parallel",),
            vmem_limit_bytes=vmem_limit),
        cost_estimate=pl.CostEstimate(
            flops=6 * b_pad * d,
            transcendentals=2 * b_pad,
            bytes_accessed=2 * b_pad * d * (itemsize + 2) + 4 * b_pad),
    )(z_i, z_j)

    # Physical concat of the *normalized bf16* halves: one O(N*D) copy, done
    # once, vs. O(N^2 * D / T) streamed by the main kernel below.
    zhat = jnp.concatenate([zhat_i, zhat_j], axis=0)         # (2*b_pad, d) bf16
    pos_full = jnp.concatenate([pos, pos], axis=0)           # (2*b_pad, 1) f32

    n0 = 2 * b_pad
    n_pad_cols = n0 - n

    # ------------- main pass: tiled (T,T) sims + online logsumexp -----------
    def main_fits(t):
        blocks = 2 * 2 * t * d * 2        # q & k bf16 blocks, double-buffered
        sim = 4 * t * t * 4               # s + exp intermediates (f32)
        misc = 16 * t * 4
        return blocks + sim + misc <= budget

    if row_tile is None:
        t = _pick_tile(n0, cap, main_fits, want_multiple_tiles=True, min_tile=16)
    else:
        t = int(row_tile)
        assert n0 % t == 0, f"row_tile={t} must divide padded N={n0}"
    grid = (n0 // t, n0 // t)

    # TODO(synk): add a K-loop over D (two-pass norms + accumulated matmul)
    # for feature dims too large for a single (T, D) VMEM block.
    # (If xprof shows exposed DMA on v5e, add pipeline_mode=pl.Buffered(3) to
    #  the key/column BlockSpec.)
    kernel = functools.partial(_nt_xent_kernel, n_pad_cols=n_pad_cols)
    per_row = pl.pallas_call(
        kernel,
        out_shape=jax.ShapeDtypeStruct((n0, 1), jnp.float32),
        grid_spec=pltpu.PrefetchScalarGridSpec(
            num_scalar_prefetch=0,
            grid=grid,
            in_specs=[
                pl.BlockSpec((t, d), lambda r, c: (r, 0)),    # query rows
                pl.BlockSpec((t, d), lambda r, c: (c, 0)),    # key rows (cols)
                pl.BlockSpec((t, 1), lambda r, c: (r, 0)),    # positive logits
            ],
            out_specs=pl.BlockSpec((t, 1), lambda r, c: (r, 0)),
            scratch_shapes=[pltpu.VMEM((t, 1), jnp.float32),
                            pltpu.VMEM((t, 1), jnp.float32)],
        ),
        compiler_params=pltpu.CompilerParams(
            dimension_semantics=("parallel", "arbitrary"),
            vmem_limit_bytes=vmem_limit),
        cost_estimate=pl.CostEstimate(
            flops=2 * n0 * n0 * d,
            transcendentals=n0 * n0 + 2 * n0,
            bytes_accessed=(n0 // t) * n0 * d * 2 + n0 * d * 2 + 3 * n0 * 4),
    )(zhat, zhat, pos_full)

    # padded rows are excluded from the reduction (their values are unused)
    return (jnp.sum(per_row[:b]) + jnp.sum(per_row[b_pad:b_pad + b])) / n


# ----------------------------------------------------------------------------
# Kernel 2: CrossEntropyLoss(reduction='sum') with float (soft) targets
#   loss = sum_i [ gsum_i * logsumexp(pred_i) - sum_c gt[i,c] * pred[i,c] ]
# Tiled over rows ('parallel') AND classes ('arbitrary', online logsumexp).
# ----------------------------------------------------------------------------
def _soft_ce_kernel(pred_ref, gt_ref, out_ref, m_sc, l_sc, gs_sc, gp_sc):
    ci = pl.program_id(1)

    @pl.when(ci == 0)
    def _init():
        m_sc[...] = jnp.full_like(m_sc, -1e30)
        l_sc[...] = jnp.zeros_like(l_sc)
        gs_sc[...] = jnp.zeros_like(gs_sc)
        gp_sc[...] = jnp.zeros_like(gp_sc)

    p = pred_ref[...].astype(jnp.float32)    # DMA native dtype, upcast here
    g = gt_ref[...].astype(jnp.float32)

    m_new = jnp.maximum(m_sc[...], jnp.max(p, axis=-1, keepdims=True))
    l_sc[...] = (l_sc[...] * jnp.exp(m_sc[...] - m_new)
                 + jnp.sum(jnp.exp(p - m_new), axis=-1, keepdims=True))
    m_sc[...] = m_new
    gs_sc[...] += jnp.sum(g, axis=-1, keepdims=True)
    gp_sc[...] += jnp.sum(g * p, axis=-1, keepdims=True)

    @pl.when(ci == pl.num_programs(1) - 1)
    def _finalize():
        lse = m_sc[...] + jnp.log(l_sc[...])
        out_ref[...] = gs_sc[...] * lse - gp_sc[...]


def soft_ce_loss(predicted, gt, row_tile=None, cls_tile=None):
    b, n_cls = predicted.shape
    gen = _gen_params()
    vmem_limit = gen["vmem_limit"]
    budget = int(vmem_limit * 0.75)
    cap = gen["tile_cap"]

    # zero-padded rows contribute exactly 0 to the summed loss
    b_pad = _round_up(b, 8)
    if b_pad != b:
        predicted = jnp.pad(predicted, ((0, b_pad - b), (0, 0)))
        gt = jnp.pad(gt, ((0, b_pad - b), (0, 0)))

    if cls_tile is None:
        tc = n_cls
        for cand in (2048, 1024, 512, 256, 128):
            if n_cls % cand == 0:
                tc = cand
                break
    else:
        tc = int(cls_tile)
        assert n_cls % tc == 0, f"cls_tile={tc} must divide n_cls={n_cls}"

    ip = predicted.dtype.itemsize
    ig = gt.dtype.itemsize

    def fits(t):
        # 2x double-buffered native blocks + 2 f32 copies + exp intermediate
        return t * tc * (2 * (ip + ig) + 3 * 4) + 32 * t <= budget

    if row_tile is None:
        t = _pick_tile(b_pad, cap, fits)
    else:
        t = int(row_tile)
        assert b_pad % t == 0, f"row_tile={t} must divide padded batch={b_pad}"

    grid = (b_pad // t, n_cls // tc)
    per_row = pl.pallas_call(
        _soft_ce_kernel,
        out_shape=jax.ShapeDtypeStruct((b_pad, 1), jnp.float32),
        grid_spec=pltpu.PrefetchScalarGridSpec(
            num_scalar_prefetch=0,
            grid=grid,
            in_specs=[pl.BlockSpec((t, tc), lambda i, j: (i, j)),
                      pl.BlockSpec((t, tc), lambda i, j: (i, j))],
            out_specs=pl.BlockSpec((t, 1), lambda i, j: (i, 0)),
            scratch_shapes=[pltpu.VMEM((t, 1), jnp.float32)] * 4,
        ),
        compiler_params=pltpu.CompilerParams(
            dimension_semantics=("parallel", "arbitrary"),
            vmem_limit_bytes=vmem_limit),
        cost_estimate=pl.CostEstimate(
            flops=6 * b_pad * n_cls,
            transcendentals=b_pad * n_cls + 2 * b_pad,
            bytes_accessed=b_pad * n_cls * (ip + ig) + 4 * b_pad),
    )(predicted, gt)
    return jnp.sum(per_row[:b])


# ----------------------------------------------------------------------------
# Module-equivalent wrapper (no learned parameters in this module)
# ----------------------------------------------------------------------------
class GeneralLossPallas:
    def __init__(self, temperature=0.07, stage="encode"):
        self.temperature = float(temperature)
        self.stage = stage

    def __call__(self, predicted, gt):
        if self.stage in {"encode"}:
            return nt_xent_loss(predicted, gt, self.temperature)
        return soft_ce_loss(predicted, gt)


# ----------------------------------------------------------------------------
# Pure-JAX references for a sanity check
# ----------------------------------------------------------------------------
def _ref_nt_xent(z_i, z_j, temperature, eps=1e-8):
    b = z_i.shape[0]
    z = jnp.concatenate(
        [z_i.reshape(b, -1), z_j.reshape(b, -1)], axis=0).astype(jnp.float32)
    n = 2 * b
    norms = jnp.linalg.norm(z, axis=-1, keepdims=True)
    sim = (z @ z.T) / jnp.maximum(norms * norms.T, eps) / temperature
    idx = jnp.arange(n)
    pos = sim[idx, jnp.where(idx < b, idx + b, idx - b)]
    sim_nd = jnp.where(jnp.eye(n, dtype=bool), -jnp.inf, sim)
    lse = jax.scipy.special.logsumexp(sim_nd, axis=1)
    return jnp.sum(lse - pos) / n


def _ref_soft_ce(pred, gt):
    logp = jax.nn.log_softmax(pred.astype(jnp.float32), axis=-1)
    return -jnp.sum(gt.astype(jnp.float32) * logp)


if __name__ == "__main__":
    key = jax.random.PRNGKey(0)
    k1, k2, k3, k4, k5, k6 = jax.random.split(key, 6)

    # --- 'encode' stage: NT-Xent contrastive loss on feature maps (NCHW) ---
    B, C, H, W = 16, 4, 8, 8            # flattened feature dim D = 256, N = 32
    temperature = 0.07
    z_i = jax.random.normal(k1, (B, C, H, W), jnp.float32)
    z_j = jax.random.normal(k2, (B, C, H, W), jnp.float32)

    loss_fn = GeneralLossPallas(temperature=temperature, stage="encode")
    ref_encode = _ref_nt_xent(z_i, z_j, temperature)

    loss_auto = jax.block_until_ready(loss_fn(z_i, z_j))
    loss_tiled = jax.block_until_ready(
        nt_xent_loss(z_i, z_j, temperature, row_tile=16))   # 2x2 tile grid
    assert jnp.allclose(loss_auto, ref_encode, rtol=2e-2, atol=2e-2), (
        loss_auto, ref_encode)
    assert jnp.allclose(loss_tiled, ref_encode, rtol=2e-2, atol=2e-2), (
        loss_tiled, ref_encode)

    # ragged batch exercises the zero-pad + in-kernel pad-correction path
    Br = 12
    z_ir = jax.random.normal(k5, (Br, C, H, W), jnp.float32)
    z_jr = jax.random.normal(k6, (Br, C, H, W), jnp.float32)
    loss_ragged = jax.block_until_ready(
        nt_xent_loss(z_ir, z_jr, temperature, row_tile=8))
    ref_ragged = _ref_nt_xent(z_ir, z_jr, temperature)
    assert jnp.allclose(loss_ragged, ref_ragged, rtol=2e-2, atol=2e-2), (
        loss_ragged, ref_ragged)

    # --- other stages: soft-target cross-entropy (sum reduction) ---
    NB, NC = 16, 384                    # 3 class tiles of 128
    pred = jax.random.normal(k3, (NB, NC), jnp.float32)
    gt = jax.nn.softmax(jax.random.normal(k4, (NB, NC), jnp.float32), axis=-1)

    loss_fn2 = GeneralLossPallas(temperature=temperature, stage="train")
    ref_ce = _ref_soft_ce(pred, gt)
    loss_ce = jax.block_until_ready(loss_fn2(pred, gt))
    loss_ce_tiled = jax.block_until_ready(
        soft_ce_loss(pred, gt, row_tile=8, cls_tile=128))
    assert jnp.allclose(loss_ce, ref_ce, rtol=1e-3, atol=1e-3), (loss_ce, ref_ce)
    assert jnp.allclose(loss_ce_tiled, ref_ce, rtol=1e-3, atol=1e-3), (
        loss_ce_tiled, ref_ce)

    # ragged rows for the CE path as well (padded rows contribute exactly 0)
    predr = jax.random.normal(k3, (12, 256), jnp.float32)
    gtr = jax.nn.softmax(jax.random.normal(k4, (12, 256), jnp.float32), axis=-1)
    loss_cer = jax.block_until_ready(soft_ce_loss(predr, gtr, row_tile=8,
                                                  cls_tile=128))
    assert jnp.allclose(loss_cer, _ref_soft_ce(predr, gtr),
                        rtol=1e-3, atol=1e-3), (loss_cer, _ref_soft_ce(predr, gtr))

    print("KERNEL_OK")
</pallas_src>

<mosaic_0001>
module attributes {stable_mosaic.version = 11 : i64} {
  func.func @_prep_kernel(%arg0: i32, %arg1: memref<16x256xf32, #tpu.memory_space<vmem>>, %arg2: memref<16x256xf32, #tpu.memory_space<vmem>>, %arg3: memref<16x256xbf16, #tpu.memory_space<vmem>>, %arg4: memref<16x256xbf16, #tpu.memory_space<vmem>>, %arg5: memref<16x1xf32, #tpu.memory_space<vmem>>) attributes {dimension_semantics = [#tpu.dimension_semantics<parallel>], iteration_bounds = array<i64: 1>, scalar_prefetch = 0 : i64, scratch_operands = 0 : i64, tpu.core_type = #tpu.core_type<tc>, window_params = [{transform_indices = @transform_0, window_bounds = array<i64: 16, 256>}, {transform_indices = @transform_1, window_bounds = array<i64: 16, 256>}, {transform_indices = @transform_2, window_bounds = array<i64: 16, 256>}, {transform_indices = @transform_3, window_bounds = array<i64: 16, 256>}, {transform_indices = @transform_4, window_bounds = array<i64: 16, 1>}]} {
    %c0 = arith.constant 0 : index
    %c0_0 = arith.constant 0 : index
    %0 = vector.load %arg1[%c0, %c0_0] : memref<16x256xf32, #tpu.memory_space<vmem>>, vector<16x256xf32>
    %1 = arith.mulf %0, %0 : vector<16x256xf32>
    %cst = arith.constant dense<0.000000e+00> : vector<16xf32>
    %2 = vector.multi_reduction <add>, %1, %cst [1] : vector<16x256xf32> to vector<16xf32>
    %3 = vector.shape_cast %2 : vector<16xf32> to vector<16x1xf32>
    %cst_1 = arith.constant 1.000000e-16 : f32
    %4 = vector.broadcast %cst_1 : f32 to vector<16x1xf32>
    %5 = arith.maximumf %3, %4 : vector<16x1xf32>
    %6 = math.rsqrt %5 : vector<16x1xf32>
    %cst_2 = arith.constant 3.77964473 : f32
    %7 = vector.broadcast %cst_2 : f32 to vector<16x1xf32>
    %8 = arith.mulf %6, %7 : vector<16x1xf32>
    %9 = vector.broadcast %8 : vector<16x1xf32> to vector<16x256xf32>
    %10 = arith.mulf %0, %9 : vector<16x256xf32>
    %c0_3 = arith.constant 0 : index
    %c0_4 = arith.constant 0 : index
    %11 = vector.load %arg2[%c0_3, %c0_4] : memref<16x256xf32, #tpu.memory_space<vmem>>, vector<16x256xf32>
    %12 = arith.mulf %11, %11 : vector<16x256xf32>
    %cst_5 = arith.constant dense<0.000000e+00> : vector<16xf32>
    %13 = vector.multi_reduction <add>, %12, %cst_5 [1] : vector<16x256xf32> to vector<16xf32>
    %14 = vector.shape_cast %13 : vector<16xf32> to vector<16x1xf32>
    %cst_6 = arith.constant 1.000000e-16 : f32
    %15 = vector.broadcast %cst_6 : f32 to vector<16x1xf32>
    %16 = arith.maximumf %14, %15 : vector<16x1xf32>
    %17 = math.rsqrt %16 : vector<16x1xf32>
    %cst_7 = arith.constant 3.77964473 : f32
    %18 = vector.broadcast %cst_7 : f32 to vector<16x1xf32>
    %19 = arith.mulf %17, %18 : vector<16x1xf32>
    %20 = vector.broadcast %19 : vector<16x1xf32> to vector<16x256xf32>
    %21 = arith.mulf %11, %20 : vector<16x256xf32>
    %22 = arith.mulf %10, %21 : vector<16x256xf32>
    %cst_8 = arith.constant dense<0.000000e+00> : vector<16xf32>
    %23 = vector.multi_reduction <add>, %22, %cst_8 [1] : vector<16x256xf32> to vector<16xf32>
    %24 = vector.shape_cast %23 : vector<16xf32> to vector<16x1xf32>
    %c0_9 = arith.constant 0 : index
    %c0_10 = arith.constant 0 : index
    %25 = vector.load %arg5[%c0_9, %c0_10] : memref<16x1xf32, #tpu.memory_space<vmem>>, vector<16x1xf32>
    tpu.vector_store %arg5[%c0_9, %c0_10], %24 {strides = array<i32>} : memref<16x1xf32, #tpu.memory_space<vmem>>, vector<16x1xf32>,
    %26 = arith.truncf %10 : vector<16x256xf32> to vector<16x256xbf16>
    %c0_11 = arith.constant 0 : index
    %c0_12 = arith.constant 0 : index
    %27 = vector.load %arg3[%c0_11, %c0_12] : memref<16x256xbf16, #tpu.memory_space<vmem>>, vector<16x256xbf16>
    tpu.vector_store %arg3[%c0_11, %c0_12], %26 {strides = array<i32>} : memref<16x256xbf16, #tpu.memory_space<vmem>>, vector<16x256xbf16>,
    %28 = arith.truncf %21 : vector<16x256xf32> to vector<16x256xbf16>
    %c0_13 = arith.constant 0 : index
    %c0_14 = arith.constant 0 : index
    %29 = vector.load %arg4[%c0_13, %c0_14] : memref<16x256xbf16, #tpu.memory_space<vmem>>, vector<16x256xbf16>
    tpu.vector_store %arg4[%c0_13, %c0_14], %28 {strides = array<i32>} : memref<16x256xbf16, #tpu.memory_space<vmem>>, vector<16x256xbf16>,
    return
  }
  func.func @transform_0(%arg0: i32) -> (i32, i32) {
    %c0_i32 = arith.constant 0 : i32
    %c0_i32_0 = arith.constant 0 : i32
    return %arg0, %c0_i32 : i32, i32
  }
  func.func @transform_1(%arg0: i32) -> (i32, i32) {
    %c0_i32 = arith.constant 0 : i32
    %c0_i32_0 = arith.constant 0 : i32
    return %arg0, %c0_i32 : i32, i32
  }
  func.func @transform_2(%arg0: i32) -> (i32, i32) {
    %c0_i32 = arith.constant 0 : i32
    %c0_i32_0 = arith.constant 0 : i32
    return %arg0, %c0_i32 : i32, i32
  }
  func.func @transform_3(%arg0: i32) -> (i32, i32) {
    %c0_i32 = arith.constant 0 : i32
    %c0_i32_0 = arith.constant 0 : i32
    return %arg0, %c0_i32 : i32, i32
  }
  func.func @transform_4(%arg0: i32) -> (i32, i32) {
    %c0_i32 = arith.constant 0 : i32
    %c0_i32_0 = arith.constant 0 : i32
    return %arg0, %c0_i32 : i32, i32
  }
}

</mosaic_0001>

<llo_original>
// kernel: tpu_custom_call.1
$region0: #{tpu_custom_call.1}
  #allocation0 [shape = 'u32[]', space=smem, size = 0x4, offset = 0x4, fixed_abs, tag = 'smem constant byte address 0x4 - core index']
  #allocation1 [shape = 'u32[144,128]{1,0:T(1,128)}', space=vmem, size = 0x12000, scoped, tag = 'internal scratch']
  %s0 = inlined_call_operand.hbm [shape: f32[16,256], index: 0, kind: input, shape index: {}]
  %s1 = inlined_call_operand.hbm [shape: f32[16,256], index: 1, kind: input, shape index: {}]
  %s2 = inlined_call_operand.hbm [shape: bf16[16,256], index: 2, kind: output, shape index: {0}]
  %s3 = inlined_call_operand.hbm [shape: bf16[16,256], index: 3, kind: output, shape index: {1}]
  %s4 = inlined_call_operand.vmem [shape: f32[16,1], index: 4, kind: output, shape index: {2}]
  %5 = xla_tuple %s2, %s3, %s4
  %s6 = sld [smem:[#allocation0]]
  $region42: #{tpu_custom_call.1} parent=0
    _
  %s8 = ssub.s32 1, %s6
  %s9 = scalar_select 0, %s8, %s6
  $region1: #{tpu_custom_call.1} parent=0
    #allocation2 [shape = 'u8[16384]{0}', space=vmem, size = 0x4000, scoped, tag = 'input window, operand 0, single buffered']
    #allocation3 [shape = 's32[1]{0}', space=sflag, size = 0x4, scoped, tag = 'scoped memory for tpu_custom_call.1']
    #allocation4 [shape = 's32[1]{0}', space=sflag, size = 0x4, scoped, tag = 'scoped memory for tpu_custom_call.1']
    #allocation5 [shape = 'u8[16384]{0}', space=vmem, size = 0x4000, scoped, tag = 'input window, operand 1, single buffered']
    #allocation6 [shape = 's32[1]{0}', space=sflag, size = 0x4, scoped, tag = 'scoped memory for tpu_custom_call.1']
    #allocation7 [shape = 'u8[8192]{0}', space=vmem, size = 0x2000, scoped, tag = 'output window, operand 0, single buffered']
    #allocation8 [shape = 'u8[8192]{0}', space=vmem, size = 0x2000, scoped, tag = 'output window, operand 1, single buffered']
    #allocation9 [shape = 's32[1]{0}', space=sflag, size = 0x4, scoped, tag = 'scoped memory for tpu_custom_call.1']
    %10 = vsyncpa [#allocation3], 0
    %11 = vsyncpa [#allocation6], 0
    %12 = vsyncpa [#allocation4], 0
    %13 = vsyncpa [#allocation9], 0
    // Predicated region
    $region2: #{tpu_custom_call.1} parent=1 // pred_check
      _
    $region3: #{tpu_custom_call.1} parent=1 // pred_check_branch
      %15 = sbr.rel (0) target = $region5
    $region4: #{tpu_custom_call.1} parent=1 // pred_region
      %s17 = ssub.s32 512, 512
      %18 = vsyncadd [#allocation3], %s17
      %s19 = sshll.u32 [#allocation2], 4
      %s20 = int_to_ptr.vmem [resolvable:$true] %s19
      %25 = dma.hbm_to_vmem [thread:$0]  %s0, 512, %s20, [#allocation3], 256, 256, 16
    $region5: #{tpu_custom_call.1} parent=1 // pred_fallthru
      _
    // Predicated region
    $region6: #{tpu_custom_call.1} parent=1 // pred_check
      _
    $region7: #{tpu_custom_call.1} parent=1 // pred_check_branch
      %27 = sbr.rel (0) target = $region9
    $region8: #{tpu_custom_call.1} parent=1 // pred_region
      %s29 = ssub.s32 512, 512
      %30 = vsyncadd [#allocation6], %s29
      %s31 = sshll.u32 [#allocation5], 4
      %s32 = int_to_ptr.vmem [resolvable:$true] %s31
      %37 = dma.hbm_to_vmem [thread:$0]  %s1, 512, %s32, [#allocation6], 256, 256, 16
    $region9: #{tpu_custom_call.1} parent=1 // pred_fallthru
      _
    // Predicated region
    $region10: #{tpu_custom_call.1} parent=1 // pred_check
      _
    $region11: #{tpu_custom_call.1} parent=1 // pred_check_branch
      %39 = sbr.rel (0) target = $region13
    $region12: #{tpu_custom_call.1} parent=1 // pred_region
      %40 = dma.done [#allocation3], 512
    $region13: #{tpu_custom_call.1} parent=1 // pred_fallthru
      _
    // Predicated region
    $region14: #{tpu_custom_call.1} parent=1 // pred_check
      _
    $region15: #{tpu_custom_call.1} parent=1 // pred_check_branch
      %42 = sbr.rel (0) target = $region17
    $region16: #{tpu_custom_call.1} parent=1 // pred_region
      %43 = dma.done [#allocation6], 512
    $region17: #{tpu_custom_call.1} parent=1 // pred_fallthru
      _
    %v44 = vld [vmem:[#allocation2] sm:$0xff]
    %v45 = vld [vmem:[#allocation2 + $0x8] sm:$0xff]
    %v46 = vld [vmem:[#allocation2 + $0x10] sm:$0xff]
    %v47 = vld [vmem:[#allocation2 + $0x18] sm:$0xff]
    %v48 = vmul.f32 %v44, %v44
    %v49 = vmul.f32 %v45, %v45
    %v50 = vmul.f32 %v46, %v46
    %v51 = vmul.f32 %v47, %v47
    %v52 = vadd.f32 %v48, %v49
    %53 = vadd.xlane.f32.xlu0 %v52
    %v54 = vpop.xlane.xlu0 %53
    %v55 = vadd.f32 %v50, %v51
    %56 = vadd.xlane.f32.xlu0 %v55
    %v57 = vpop.xlane.xlu0 %56
    %v58 = vmax.f32 %v54, 1e-16
    %v59 = vmax.f32 %v57, 1e-16
    %v60 = vrsqrt.pop %v58
    %v61 = vrsqrt.pop %v59
    %v62 = vmul.f32 %v60, 3.7796447
    %v63 = vmul.f32 %v61, 3.7796447
    %v64 = vmul.f32 %v44, %v62
    %v65 = vmul.f32 %v45, %v62
    %v66 = vmul.f32 %v46, %v63
    %v67 = vmul.f32 %v47, %v63
    %v68 = vld [vmem:[#allocation5] sm:$0xff]
    %v69 = vld [vmem:[#allocation5 + $0x8] sm:$0xff]
    %v70 = vld [vmem:[#allocation5 + $0x10] sm:$0xff]
    %v71 = vld [vmem:[#allocation5 + $0x18] sm:$0xff]
    %v72 = vmul.f32 %v68, %v68
    %v73 = vmul.f32 %v69, %v69
    %v74 = vmul.f32 %v70, %v70
    %v75 = vmul.f32 %v71, %v71
    %v76 = vadd.f32 %v72, %v73
    %77 = vadd.xlane.f32.xlu0 %v76
    %v78 = vpop.xlane.xlu0 %77
    %v79 = vadd.f32 %v74, %v75
    %80 = vadd.xlane.f32.xlu0 %v79
    %v81 = vpop.xlane.xlu0 %80
    %v82 = vmax.f32 %v78, 1e-16
    %v83 = vmax.f32 %v81, 1e-16
    %v84 = vrsqrt.pop %v82
    %v85 = vrsqrt.pop %v83
    %v86 = vmul.f32 %v84, 3.7796447
    %v87 = vmul.f32 %v85, 3.7796447
    %v88 = vmul.f32 %v68, %v86
    %v89 = vmul.f32 %v69, %v86
    %v90 = vmul.f32 %v70, %v87
    %v91 = vmul.f32 %v71, %v87
    %v92 = vmul.f32 %v64, %v88
    %v93 = vmul.f32 %v65, %v89
    %v94 = vmul.f32 %v66, %v90
    %v95 = vmul.f32 %v67, %v91
    %v96 = vadd.f32 %v92, %v93
    %97 = vadd.xlane.f32.xlu0 %v96
    %v98 = vpop.xlane.xlu0 %97
    %v99 = vadd.f32 %v94, %v95
    %100 = vadd.xlane.f32.xlu0 %v99
    %v101 = vpop.xlane.xlu0 %100
    %vm102 = vcmask 7168
    %103 = vst.msk [vmem:[%s4] sm:$0xff] %vm102, %v98
    %104 = vst.msk [vmem:[%s4 + $0x8] sm:$0xff] %vm102, %v101
    %v105 = vpack.c.bf16 %v66, %v64
    %v106 = vpack.c.bf16 %v67, %v65
    %v109 = vunpack.c.l.b16 %v105
    %v110 = vunpack.c.l.b16 %v106
    %v111 = vunpack.c.h.b16 %v105
    %v112 = vunpack.c.h.b16 %v106
    %v113 = vpack.c.b16 %v110, %v109
    %v114 = vpack.c.b16 %v112, %v111
    %117 = vst [vmem:[#allocation7] sm:$0xff] %v113
    %118 = vst [vmem:[#allocation7 + $0x8] sm:$0xff] %v114
    %v119 = vpack.c.bf16 %v90, %v88
    %v120 = vpack.c.bf16 %v91, %v89
    %v123 = vunpack.c.l.b16 %v119
    %v124 = vunpack.c.l.b16 %v120
    %v125 = vunpack.c.h.b16 %v119
    %v126 = vunpack.c.h.b16 %v120
    %v127 = vpack.c.b16 %v124, %v123
    %v128 = vpack.c.b16 %v126, %v125
    %131 = vst [vmem:[#allocation8] sm:$0xff] %v127
    %132 = vst [vmem:[#allocation8 + $0x8] sm:$0xff] %v128
    // Predicated region
    $region18: #{tpu_custom_call.1} parent=1 // pred_check
      _
    $region19: #{tpu_custom_call.1} parent=1 // pred_check_branch
      %134 = sbr.rel (0) target = $region21
    $region20: #{tpu_custom_call.1} parent=1 // pred_region
      %s136 = ssub.s32 256, 256
      %137 = vsyncadd [#allocation4], %s136
      %s138 = sshll.u32 [#allocation7], 4
      %s139 = int_to_ptr.vmem [resolvable:$true] %s138
      %144 = dma.vmem_to_hbm [thread:$0]  %s139, 256, %s2, [#allocation4], 128, 128, 8
    $region21: #{tpu_custom_call.1} parent=1 // pred_fallthru
      _
    // Predicated region
    $region22: #{tpu_custom_call.1} parent=1 // pred_check
      _
    $region23: #{tpu_custom_call.1} parent=1 // pred_check_branch
      %146 = sbr.rel (0) target = $region25
    $region24: #{tpu_custom_call.1} parent=1 // pred_region
      %s148 = ssub.s32 256, 256
      %149 = vsyncadd [#allocation9], %s148
      %s150 = sshll.u32 [#allocation8], 4
      %s151 = int_to_ptr.vmem [resolvable:$true] %s150
      %156 = dma.vmem_to_hbm [thread:$0]  %s151, 256, %s3, [#allocation9], 128, 128, 8
    $region25: #{tpu_custom_call.1} parent=1 // pred_fallthru
      _
    // Predicated region
    $region26: #{tpu_custom_call.1} parent=1 // pred_check
      _
    $region27: #{tpu_custom_call.1} parent=1 // pred_check_branch
      %158 = sbr.rel (0) target = $region29
    $region28: #{tpu_custom_call.1} parent=1 // pred_region
      _
    $region29: #{tpu_custom_call.1} parent=1 // pred_fallthru
      _
    // Predicated region
    $region30: #{tpu_custom_call.1} parent=1 // pred_check
      _
    $region31: #{tpu_custom_call.1} parent=1 // pred_check_branch
      %160 = sbr.rel (0) target = $region33
    $region32: #{tpu_custom_call.1} parent=1 // pred_region
      %161 = dma.done [#allocation4], 256
    $region33: #{tpu_custom_call.1} parent=1 // pred_fallthru
      _
    // Predicated region
    $region34: #{tpu_custom_call.1} parent=1 // pred_check
      _
    $region35: #{tpu_custom_call.1} parent=1 // pred_check_branch
      %163 = sbr.rel (0) target = $region37
    $region36: #{tpu_custom_call.1} parent=1 // pred_region
      %164 = dma.done [#allocation9], 256
    $region37: #{tpu_custom_call.1} parent=1 // pred_fallthru
      _
    // Predicated region
    $region38: #{tpu_custom_call.1} parent=1 // pred_check
      _
    $region39: #{tpu_custom_call.1} parent=1 // pred_check_branch
      %166 = sbr.rel (0) target = $region41
    $region40: #{tpu_custom_call.1} parent=1 // pred_region
      _
    $region41: #{tpu_custom_call.1} parent=1 // pred_fallthru
      _
    %167 = vsyncpa [#allocation3], 1
    %168 = vsyncpa [#allocation6], 1
    %169 = vsyncpa [#allocation4], 1
    %170 = vsyncpa [#allocation9], 1

</llo_original>
